<compile_context>
chip_gen: v6e
topology: v6e:2x2x1
jax: 0.10.0
libtpu: 0.0.40
codegen_flags: <defaults>
</compile_context>

<pallas_src>
import jax
import jax.numpy as jnp
from jax import lax
from jax.experimental import pallas as pl
from jax.experimental.pallas import tpu as pltpu
from jax.scipy.linalg import block_diag

INPUT_DIM = 4
HIDDEN_DIM = 32
EMBED_DIM = 64
BN_EPS = 1e-5

_PACK = 4                        # batch rows folded per lane row
_PIN = _PACK * INPUT_DIM         # 16   packed input features
_PHID = _PACK * HIDDEN_DIM       # 128  packed hidden features (lane dense)
_POUT = _PACK * EMBED_DIM        # 256  packed output features (lane dense)

_VMEM_LIMIT_BYTES = 32 * 1024 * 1024
_DEFAULT_TILE_BATCH = 16384      # big tiles on all generations (v5e/v6e/v7x)


# --------------------------------------------------------------------------
# Kernels
# --------------------------------------------------------------------------
def _bn_stats_kernel(x_ref, w1_ref, stats_ref):
    """Pass 1: per-block partial sum / sum-of-squares of x @ W1 (no bias).

    Zero-padded rows contribute exactly zero, so no masking is needed.
    """
    hx = jnp.dot(x_ref[...], w1_ref[...], preferred_element_type=jnp.float32)
    stats_ref[0:1, :] = jnp.sum(hx, axis=0, keepdims=True)
    stats_ref[1:2, :] = jnp.sum(hx * hx, axis=0, keepdims=True)


def _embed_kernel(x_ref, w1_ref, b1_ref, w2_ref, b2_ref, out_ref):
    """Pass 2: h = relu(x @ W1s + b1s);  out = h @ W2 + b2.

    The BN scale/shift is pre-folded into W1s / b1s by the wrapper.
    """
    h = jnp.dot(x_ref[...], w1_ref[...], preferred_element_type=jnp.float32)
    h = jnp.maximum(h + b1_ref[...], 0.0)
    out_ref[...] = (
        jnp.dot(h, w2_ref[...], preferred_element_type=jnp.float32)
        + b2_ref[...])


# --------------------------------------------------------------------------
# Wrapper
# --------------------------------------------------------------------------
def _round_up(n, m):
    return ((n + m - 1) // m) * m


def demographic_embed(x, w1_t, b1, gamma, beta, w2_t, b2, *, tile_batch=None):
    """x: (B, INPUT_DIM) f32 -> (B, EMBED_DIM) f32.  w*_t are [in, out]."""
    # TODO(synk): nn.BatchNorm1d training-mode running_mean/running_var buffer
    # updates are a module side effect and are not emitted (forward parity only).
    B = x.shape[0]
    if tile_batch is None:
        tile_batch = _DEFAULT_TILE_BATCH

    # ---- wrapper-side packing (cheap / metadata-level ops) ----------------
    n_pairs = -(-B // _PACK)                      # packed rows needed
    tile_p_cap = max(8, (tile_batch // _PACK) // 8 * 8)
    tile_p = min(tile_p_cap, _round_up(n_pairs, 8))
    n_pairs_pad = _round_up(n_pairs, tile_p)
    n_blocks = n_pairs_pad // tile_p

    xp = jnp.pad(x, ((0, _PACK * n_pairs_pad - B), (0, 0)))
    xp = xp.reshape(n_pairs_pad, _PIN)

    w1p = block_diag(*([w1_t] * _PACK))                      # (16, 128)
    w2p = block_diag(*([w2_t] * _PACK))                      # (128, 256)
    b1_row = b1.reshape(1, HIDDEN_DIM)
    b2p = jnp.tile(b2.reshape(1, EMBED_DIM), (1, _PACK))     # (1, 256)

    x_spec = pl.BlockSpec((tile_p, _PIN), lambda i: (i, 0))
    const = lambda i: (0, 0)

    # ---- pass 1: per-block partial BN statistics ("parallel" -> megacore) -
    stats = pl.pallas_call(
        _bn_stats_kernel,
        out_shape=jax.ShapeDtypeStruct((n_blocks, 2, _PHID), jnp.float32),
        grid=(n_blocks,),
        in_specs=[x_spec,
                  pl.BlockSpec((_PIN, _PHID), const)],
        out_specs=pl.BlockSpec((None, 2, _PHID), lambda i: (i, 0, 0)),
        compiler_params=pltpu.CompilerParams(
            dimension_semantics=("parallel",),
            vmem_limit_bytes=_VMEM_LIMIT_BYTES),
        cost_estimate=pl.CostEstimate(
            flops=n_pairs_pad * _PHID * (2 * _PIN + 3),
            transcendentals=0,
            bytes_accessed=n_pairs_pad * _PIN * 4
            + (_PIN * _PHID + n_blocks * 2 * _PHID) * 4),
    )(xp, w1p)

    # ---- reduce partials, fold packed halves, fuse BN into fc1 ------------
    s_all = jnp.sum(stats, axis=0)                                  # (2, 128)
    s_all = jnp.sum(s_all.reshape(2, _PACK, HIDDEN_DIM), axis=1)    # (2, 32)
    s, s2 = s_all[0], s_all[1]
    mean_lin = s / B                      # mean of x @ W1 (no bias)
    mean = mean_lin + b1.reshape(-1)      # mean of fc1(x)
    var = s2 / B - mean_lin * mean_lin    # biased var (PyTorch training fwd)
    inv = lax.rsqrt(var + BN_EPS)
    scale = gamma.reshape(-1) * inv
    shift = beta.reshape(-1) - mean * scale
    scale_p = jnp.tile(scale.reshape(1, HIDDEN_DIM), (1, _PACK))    # (1, 128)
    shift_p = jnp.tile(shift.reshape(1, HIDDEN_DIM), (1, _PACK))
    b1p = jnp.tile(b1_row, (1, _PACK))
    w1s = w1p * scale_p                   # BN scale folded into fc1 weights
    b1s = b1p * scale_p + shift_p         # BN scale+shift folded into fc1 bias

    # ---- pass 2: fc1(+BN) + ReLU + fc2, lane-dense 256-wide output --------
    out_p = pl.pallas_call(
        _embed_kernel,
        out_shape=jax.ShapeDtypeStruct((n_pairs_pad, _POUT), jnp.float32),
        grid=(n_blocks,),
        in_specs=[x_spec,
                  pl.BlockSpec((_PIN, _PHID), const),
                  pl.BlockSpec((1, _PHID), const),
                  pl.BlockSpec((_PHID, _POUT), const),
                  pl.BlockSpec((1, _POUT), const)],
        out_specs=pl.BlockSpec((tile_p, _POUT), lambda i: (i, 0)),
        compiler_params=pltpu.CompilerParams(
            dimension_semantics=("parallel",),
            vmem_limit_bytes=_VMEM_LIMIT_BYTES),
        cost_estimate=pl.CostEstimate(
            flops=n_pairs_pad * (2 * _PIN * _PHID + 2 * _PHID * _POUT
                                 + 2 * _PHID + 2 * _POUT),
            transcendentals=0,
            bytes_accessed=n_pairs_pad * (_PIN + _POUT) * 4
            + (_PIN * _PHID + _PHID * _POUT + _PHID + _POUT) * 4),
    )(xp, w1s, b1s, w2p, b2p)

    # (n_pairs_pad, 256) -> (4*n_pairs_pad, 64) is a free row-major reshape.
    return out_p.reshape(_PACK * n_pairs_pad, EMBED_DIM)[:B]


# --------------------------------------------------------------------------
# Parameters, reference, demo
# --------------------------------------------------------------------------
def init_params(key):
    """Deterministic synthetic parameters (PyTorch-like uniform fan-in init)."""
    k1, k2, k3, k4 = jax.random.split(key, 4)
    bound1 = 1.0 / jnp.sqrt(INPUT_DIM)
    bound2 = 1.0 / jnp.sqrt(HIDDEN_DIM)
    # Stored already transposed: [in_features, out_features]
    w1_t = jax.random.uniform(k1, (INPUT_DIM, HIDDEN_DIM), jnp.float32,
                              -bound1, bound1)
    b1 = jax.random.uniform(k2, (1, HIDDEN_DIM), jnp.float32, -bound1, bound1)
    w2_t = jax.random.uniform(k3, (HIDDEN_DIM, EMBED_DIM), jnp.float32,
                              -bound2, bound2)
    b2 = jax.random.uniform(k4, (1, EMBED_DIM), jnp.float32, -bound2, bound2)
    gamma = jnp.ones((1, HIDDEN_DIM), jnp.float32)
    beta = jnp.zeros((1, HIDDEN_DIM), jnp.float32)
    return w1_t, b1, gamma, beta, w2_t, b2


def reference_forward(x, w1_t, b1, gamma, beta, w2_t, b2):
    h = x @ w1_t + b1
    mean = jnp.mean(h, axis=0, keepdims=True)
    var = jnp.mean((h - mean) ** 2, axis=0, keepdims=True)
    h = (h - mean) / jnp.sqrt(var + BN_EPS) * gamma + beta
    h = jnp.maximum(h, 0.0)
    return h @ w2_t + b2


if __name__ == "__main__":
    key = jax.random.PRNGKey(0)
    k_x, k_p = jax.random.split(key)

    B = 37   # small + odd: exercises row packing, tile padding, stat folding
    x = jax.random.normal(k_x, (B, INPUT_DIM), jnp.float32)
    params = init_params(k_p)
    ref = reference_forward(x, *params)

    # Default (single-tile) path.
    out = jax.block_until_ready(demographic_embed(x, *params))
    assert out.shape == (B, EMBED_DIM), out.shape
    assert jnp.allclose(out, ref, atol=1e-4, rtol=1e-4), \
        float(jnp.max(jnp.abs(out - ref)))

    # Tiny tile -> multi-block grid: exercises the cross-tile BN reduction.
    out_tiled = jax.block_until_ready(
        demographic_embed(x, *params, tile_batch=16))
    assert jnp.allclose(out_tiled, ref, atol=1e-4, rtol=1e-4), \
        float(jnp.max(jnp.abs(out_tiled - ref)))

    print("KERNEL_OK")
</pallas_src>

<mosaic_0001>
module attributes {stable_mosaic.version = 11 : i64} {
  func.func @_bn_stats_kernel(%arg0: i32, %arg1: memref<16x16xf32, #tpu.memory_space<vmem>>, %arg2: memref<16x128xf32, #tpu.memory_space<vmem>>, %arg3: memref<1x2x128xf32, #tpu.memory_space<vmem>>) attributes {dimension_semantics = [#tpu.dimension_semantics<parallel>], iteration_bounds = array<i64: 1>, scalar_prefetch = 0 : i64, scratch_operands = 0 : i64, tpu.core_type = #tpu.core_type<tc>, window_params = [{transform_indices = @transform_0, window_bounds = array<i64: 16, 16>}, {pipeline_mode = #tpu.pipeline_mode<synchronous>, transform_indices = @transform_1, window_bounds = array<i64: 16, 128>}, {transform_indices = @transform_2, window_bounds = array<i64: 1, 2, 128>}]} {
    %c0 = arith.constant 0 : index
    %c0_0 = arith.constant 0 : index
    %0 = vector.load %arg1[%c0, %c0_0] : memref<16x16xf32, #tpu.memory_space<vmem>>, vector<16x16xf32>
    %c0_1 = arith.constant 0 : index
    %c0_2 = arith.constant 0 : index
    %1 = vector.load %arg2[%c0_1, %c0_2] : memref<16x128xf32, #tpu.memory_space<vmem>>, vector<16x128xf32>
    %cst = arith.constant dense<0.000000e+00> : vector<16x128xf32>
    %2 = tpu.matmul %0, %1, %cst {dimension_numbers = #tpu.dot_dimension_numbers<[1], [0], [0], [1], [0, 0, 1, 1], [], []>} : vector<16x16xf32>, vector<16x128xf32>, vector<16x128xf32> -> vector<16x128xf32>
    %cst_3 = arith.constant dense<0.000000e+00> : vector<128xf32>
    %3 = vector.multi_reduction <add>, %2, %cst_3 [0] : vector<16x128xf32> to vector<128xf32>
    %4 = vector.shape_cast %3 : vector<128xf32> to vector<1x128xf32>
    %c0_4 = arith.constant 0 : index
    %c0_5 = arith.constant 0 : index
    %c0_6 = arith.constant 0 : index
    %5 = vector.load %arg3[%c0_4, %c0_5, %c0_6] : memref<1x2x128xf32, #tpu.memory_space<vmem>>, vector<1x1x128xf32>
    %6 = vector.shape_cast %5 : vector<1x1x128xf32> to vector<1x128xf32>
    %7 = vector.shape_cast %4 : vector<1x128xf32> to vector<1x1x128xf32>
    tpu.vector_store %arg3[%c0_4, %c0_5, %c0_6], %7 {strides = array<i32>} : memref<1x2x128xf32, #tpu.memory_space<vmem>>, vector<1x1x128xf32>,
    %8 = arith.mulf %2, %2 : vector<16x128xf32>
    %cst_7 = arith.constant dense<0.000000e+00> : vector<128xf32>
    %9 = vector.multi_reduction <add>, %8, %cst_7 [0] : vector<16x128xf32> to vector<128xf32>
    %10 = vector.shape_cast %9 : vector<128xf32> to vector<1x128xf32>
    %c0_8 = arith.constant 0 : index
    %c1 = arith.constant 1 : index
    %c0_9 = arith.constant 0 : index
    %11 = vector.load %arg3[%c0_8, %c1, %c0_9] : memref<1x2x128xf32, #tpu.memory_space<vmem>>, vector<1x1x128xf32>
    %12 = vector.shape_cast %11 : vector<1x1x128xf32> to vector<1x128xf32>
    %13 = vector.shape_cast %10 : vector<1x128xf32> to vector<1x1x128xf32>
    tpu.vector_store %arg3[%c0_8, %c1, %c0_9], %13 {strides = array<i32>} : memref<1x2x128xf32, #tpu.memory_space<vmem>>, vector<1x1x128xf32>,
    return
  }
  func.func @transform_0(%arg0: i32) -> (i32, i32) {
    %c0_i32 = arith.constant 0 : i32
    %c0_i32_0 = arith.constant 0 : i32
    return %arg0, %c0_i32 : i32, i32
  }
  func.func @transform_1(%arg0: i32) -> (i32, i32) {
    %c0_i32 = arith.constant 0 : i32
    %c0_i32_0 = arith.constant 0 : i32
    %c0_i32_1 = arith.constant 0 : i32
    return %c0_i32, %c0_i32_0 : i32, i32
  }
  func.func @transform_2(%arg0: i32) -> (i32, i32, i32) {
    %c0_i32 = arith.constant 0 : i32
    %c0_i32_0 = arith.constant 0 : i32
    %c0_i32_1 = arith.constant 0 : i32
    return %arg0, %c0_i32, %c0_i32_0 : i32, i32, i32
  }
}

</mosaic_0001>

<llo_original>
// kernel: tpu_custom_call.1
$region0: #{tpu_custom_call.1}
  #allocation0 [shape = 'u32[]', space=smem, size = 0x4, offset = 0x4, fixed_abs, tag = 'smem constant byte address 0x4 - core index']
  #allocation1 [shape = 'u32[144,128]{1,0:T(1,128)}', space=vmem, size = 0x12000, scoped, tag = 'internal scratch']
  %s0 = inlined_call_operand.hbm [shape: f32[16,16], index: 0, kind: input, shape index: {}]
  %s1 = inlined_call_operand.hbm [shape: f32[16,128], index: 1, kind: input, shape index: {}]
  %s2 = inlined_call_operand.hbm [shape: f32[1,2,128], index: 2, kind: output, shape index: {}]
  %s3 = sld [smem:[#allocation0]]
  $region26: #{tpu_custom_call.1} parent=0
    _
  %s5 = ssub.s32 1, %s3
  %s6 = scalar_select 0, %s5, %s3
  $region1: #{tpu_custom_call.1} parent=0
    #allocation2 [shape = 'u8[8192]{0}', space=vmem, size = 0x2000, scoped, tag = 'input window, operand 0, single buffered']
    #allocation3 [shape = 's32[1]{0}', space=sflag, size = 0x4, scoped, tag = 'scoped memory for tpu_custom_call.1']
    #allocation4 [shape = 's32[1]{0}', space=sflag, size = 0x4, scoped, tag = 'scoped memory for tpu_custom_call.1']
    #allocation5 [shape = 'u8[8192]{0}', space=vmem, size = 0x2000, scoped, tag = 'input window, operand 1, single buffered']
    #allocation6 [shape = 's32[1]{0}', space=sflag, size = 0x4, scoped, tag = 'scoped memory for tpu_custom_call.1']
    #allocation7 [shape = 'u8[1024]{0}', space=vmem, size = 0x400, scoped, tag = 'output window, operand 0, single buffered']
    %7 = vsyncpa [#allocation3], 0
    %8 = vsyncpa [#allocation6], 0
    %9 = vsyncpa [#allocation4], 0
    // Predicated region
    $region2: #{tpu_custom_call.1} parent=1 // pred_check
      _
    $region3: #{tpu_custom_call.1} parent=1 // pred_check_branch
      %11 = sbr.rel (0) target = $region5
    $region4: #{tpu_custom_call.1} parent=1 // pred_region
      %s13 = ssub.s32 256, 256
      %14 = vsyncadd [#allocation3], %s13
      %s15 = sshll.u32 [#allocation2], 4
      %s16 = int_to_ptr.vmem [resolvable:$true] %s15
      %21 = dma.hbm_to_vmem [thread:$0]  %s0, 256, %s16, [#allocation3], 128, 128, 8
    $region5: #{tpu_custom_call.1} parent=1 // pred_fallthru
      _
    // Predicated region
    $region6: #{tpu_custom_call.1} parent=1 // pred_check
      _
    $region7: #{tpu_custom_call.1} parent=1 // pred_check_branch
      %23 = sbr.rel (0) target = $region9
    $region8: #{tpu_custom_call.1} parent=1 // pred_region
      %s25 = ssub.s32 256, 256
      %26 = vsyncadd [#allocation6], %s25
      %s27 = sshll.u32 [#allocation5], 4
      %s28 = int_to_ptr.vmem [resolvable:$true] %s27
      %33 = dma.hbm_to_vmem [thread:$0]  %s1, 256, %s28, [#allocation6], 128, 128, 8
    $region9: #{tpu_custom_call.1} parent=1 // pred_fallthru
      _
    // Predicated region
    $region10: #{tpu_custom_call.1} parent=1 // pred_check
      _
    $region11: #{tpu_custom_call.1} parent=1 // pred_check_branch
      %35 = sbr.rel (0) target = $region13
    $region12: #{tpu_custom_call.1} parent=1 // pred_region
      %36 = dma.done [#allocation3], 256
    $region13: #{tpu_custom_call.1} parent=1 // pred_fallthru
      _
    // Predicated region
    $region14: #{tpu_custom_call.1} parent=1 // pred_check
      _
    $region15: #{tpu_custom_call.1} parent=1 // pred_check_branch
      %38 = sbr.rel (0) target = $region17
    $region16: #{tpu_custom_call.1} parent=1 // pred_region
      %39 = dma.done [#allocation6], 256
    $region17: #{tpu_custom_call.1} parent=1 // pred_fallthru
      _
    %v40 = vld [vmem:[#allocation2] sm:$0xff]
    %v41 = vld [vmem:[#allocation2 + $0x8] sm:$0xff]
    %v42 = vld [vmem:[#allocation5] sm:$0xff]
    %v43 = vld [vmem:[#allocation5 + $0x8] sm:$0xff]
    %vm44 = vcmask 130048
    %v46 = vsel %vm44, %v40, 0
    %v49 = vsel %vm44, %v41, 0
    %51 = vmatprep.subr.mxu0 0.0
    %52 = vmatpush1.msra.mxu0 0.0
    %53 = vmatprep.subr.mxu0 0.0
    %54 = vmatpush1.msra.mxu0 0.0
    %55 = vmatprep.subr.mxu0 0.0
    %56 = vmatpush1.msra.mxu0 0.0
    %57 = vmatprep.subr.mxu0 0.0
    %58 = vmatpush1.msra.mxu0 0.0
    %59 = vmatprep.subr.mxu0 0.0
    %60 = vmatpush1.msra.mxu0 0.0
    %61 = vmatprep.subr.mxu0 0.0
    %62 = vmatpush1.msra.mxu0 0.0
    %63 = vmatprep.subr.mxu0 0.0
    %64 = vmatpush1.msra.mxu0 0.0
    %65 = vmatprep.subr.mxu0 0.0
    %66 = vmatpush1.msra.mxu0 0.0
    %67 = vmatprep.subr.mxu0 0.0
    %68 = vmatpush1.msra.mxu0 0.0
    %69 = vmatprep.subr.mxu0 0.0
    %70 = vmatpush1.msra.mxu0 0.0
    %71 = vmatprep.subr.mxu0 0.0
    %72 = vmatpush1.msra.mxu0 0.0
    %73 = vmatprep.subr.mxu0 0.0
    %74 = vmatpush1.msra.mxu0 0.0
    %75 = vmatprep.subr.mxu0 0.0
    %76 = vmatpush1.msra.mxu0 0.0
    %77 = vmatprep.subr.mxu0 0.0
    %78 = vmatpush1.msra.mxu0 0.0
    %79 = vmatprep.subr.mxu0 0.0
    %80 = vmatpush1.msra.mxu0 %v43
    %81 = vmatprep.subr.mxu0 0.0
    %82 = vmatpush1.msra.mxu0 %v42
    %83 = vmatprep.subr.mxu0 0.0
    %84 = vmatpush2.msra.mxu0 0.0
    %85 = vmatprep.subr.mxu0 0.0
    %86 = vmatpush2.msra.mxu0 0.0
    %87 = vmatprep.subr.mxu0 0.0
    %88 = vmatpush2.msra.mxu0 0.0
    %89 = vmatprep.subr.mxu0 0.0
    %90 = vmatpush2.msra.mxu0 0.0
    %91 = vmatprep.subr.mxu0 0.0
    %92 = vmatpush2.msra.mxu0 0.0
    %93 = vmatprep.subr.mxu0 0.0
    %94 = vmatpush2.msra.mxu0 0.0
    %95 = vmatprep.subr.mxu0 0.0
    %96 = vmatpush2.msra.mxu0 0.0
    %97 = vmatprep.subr.mxu0 0.0
    %98 = vmatpush2.msra.mxu0 0.0
    %99 = vmatprep.subr.mxu0 0.0
    %100 = vmatpush2.msra.mxu0 0.0
    %101 = vmatprep.subr.mxu0 0.0
    %102 = vmatpush2.msra.mxu0 0.0
    %103 = vmatprep.subr.mxu0 0.0
    %104 = vmatpush2.msra.mxu0 0.0
    %105 = vmatprep.subr.mxu0 0.0
    %106 = vmatpush2.msra.mxu0 0.0
    %107 = vmatprep.subr.mxu0 0.0
    %108 = vmatpush2.msra.mxu0 0.0
    %109 = vmatprep.subr.mxu0 0.0
    %110 = vmatpush2.msra.mxu0 0.0
    %111 = vmatprep.subr.mxu0 0.0
    %112 = vmatpush2.msra.mxu0 0.0
    %113 = vmatprep.subr.mxu0 0.0
    %114 = vmatpush2.msra.mxu0 0.0
    %115 = vmatprep.mubr.f32.mxu0 0.0
    %116 = vmatmul.mubr.f32.gmra.mxu0 %v46
    %v117 = vpop.f32.mrf.mxu0
    %v118 = vadd.f32 0.0, %v117
    %v119 = vpop.f32.mrf.mxu0
    %120 = vmatprep.mubr.f32.mxu0 0.0
    %121 = vmatmul.mubr.f32.gmra.mxu0 %v49
    %v122 = vpop.f32.mrf.mxu0
    %v123 = vadd.f32 0.0, %v122
    %v124 = vpop.f32.mrf.mxu0
    %125 = vdwg.mxu0
    %v126 = vadd.f32 %v118, %v123
    %v127 = vrot.slane %v126, 4
    %v128 = vadd.f32 %v126, %v127
    %v129 = vrot.slane %v128, 2
    %v130 = vadd.f32 %v128, %v129
    %v131 = vrot.slane %v130, 1
    %v132 = vadd.f32 %v130, %v131
    %133 = vst [vmem:[#allocation7] sm:$0x1] %v132
    %v134 = vmul.f32 %v118, %v118
    %v135 = vmul.f32 %v123, %v123
    %v136 = vadd.f32 %v134, %v135
    %v137 = vrot.slane %v136, 4
    %v138 = vadd.f32 %v136, %v137
    %v139 = vrot.slane %v138, 2
    %v140 = vadd.f32 %v138, %v139
    %v141 = vrot.slane %v140, 1
    %v142 = vadd.f32 %v140, %v141
    %143 = vst [vmem:[#allocation7 + $0x1] sm:$0x1] %v142
    // Predicated region
    $region18: #{tpu_custom_call.1} parent=1 // pred_check
      _
    $region19: #{tpu_custom_call.1} parent=1 // pred_check_branch
      %145 = sbr.rel (0) target = $region21
    $region20: #{tpu_custom_call.1} parent=1 // pred_region
      %s147 = ssub.s32 32, 32
      %148 = vsyncadd [#allocation4], %s147
      %s150 = sshll.u32 [#allocation7], 4
      %s151 = int_to_ptr.vmem [resolvable:$true] %s150
      %153 = dma.vmem_to_hbm [thread:$0]  %s151, 32, %s2, [#allocation4]
    $region21: #{tpu_custom_call.1} parent=1 // pred_fallthru
      _
    // Predicated region
    $region22: #{tpu_custom_call.1} parent=1 // pred_check
      _
    $region23: #{tpu_custom_call.1} parent=1 // pred_check_branch
      %155 = sbr.rel (0) target = $region25
    $region24: #{tpu_custom_call.1} parent=1 // pred_region
      %156 = dma.done [#allocation4], 32
    $region25: #{tpu_custom_call.1} parent=1 // pred_fallthru
      _
    %157 = vsyncpa [#allocation3], 1
    %158 = vsyncpa [#allocation6], 1
    %159 = vsyncpa [#allocation4], 1

</llo_original>
